<compile_context>
chip_gen: v5e
topology: v5e:2x2
jax: 0.10.0
libtpu: 0.0.40
codegen_flags: <defaults>
</compile_context>

<pallas_src>
import functools

import jax
import jax.numpy as jnp
from jax.experimental import pallas as pl
from jax.experimental.pallas import tpu as pltpu

LANES = 128
SUBLANES = 8


def _chip_config():
    """Returns (num_tensorcores, per-input block byte budget)."""
    kind = ""
    try:
        kind = jax.devices()[0].device_kind.lower()
    except Exception:  # defensive: no devices visible at trace time
        pass
    if "tpu7" in kind or "v7" in kind:
        # v7x: 2 TensorCores/chip, 64 MiB VMEM per TC -> cap blocks at 4 MiB.
        return 2, 4 * 1024 * 1024
    if "v6" in kind:
        # v6e: 1 TC, 32 MiB scoped-VMEM default -> 4 MiB blocks (16 MiB buffered).
        return 1, 4 * 1024 * 1024
    # v5e and unknown chips: conservative 2 MiB blocks (16 MiB scoped default).
    return 1, 2 * 1024 * 1024


def _charbonnier_kernel(pred_ref, label_ref, out_ref, *, eps, rows_total,
                        tile_rows, tiles_per_part, acc_rows):
    p = pl.program_id(0)
    j = pl.program_id(1)

    @pl.when(j == 0)
    def _():
        out_ref[...] = jnp.zeros_like(out_ref)

    # Logical (unclamped) tile index for this step.
    t = p * tiles_per_part + j
    row_start = t * tile_rows

    d = pred_ref[...].astype(jnp.float32) - label_ref[...].astype(jnp.float32)
    vals = jnp.sqrt(d * d + eps)

    folds = tile_rows // acc_rows
    is_full = row_start + tile_rows <= rows_total

    # Fast path: interior tile -> no iota / compare / select work at all.
    @pl.when(is_full)
    def _():
        part = jnp.sum(vals.reshape(folds, acc_rows, LANES), axis=0)
        out_ref[...] += part.reshape(out_ref.shape)

    # Boundary path: last partial tile or clamped overshoot tile -> mask the
    # padded rows (whatever garbage the edge block read, incl. NaN after sqrt).
    @pl.when(jnp.logical_not(is_full))
    def _():
        row_ids = row_start + jax.lax.broadcasted_iota(
            jnp.int32, (tile_rows, LANES), 0)
        masked = jnp.where(row_ids < rows_total, vals, 0.0)
        part = jnp.sum(masked.reshape(folds, acc_rows, LANES), axis=0)
        out_ref[...] += part.reshape(out_ref.shape)


def charbonnier_loss(pred, label, eps=0.01, *, min_kernel_elems=1024):
    assert pred.shape == label.shape, (pred.shape, label.shape)
    eps = float(eps)
    n_elems = int(pred.size)

    flat_p = pred.reshape(-1)
    flat_l = label.reshape(-1)

    def _jnp_charbonnier_sum(a, b):
        d = a.astype(jnp.float32) - b.astype(jnp.float32)
        return jnp.sum(jnp.sqrt(d * d + eps))

    # Main region: a multiple of 8*128 elements -> (rows, 128) with rows % 8 == 0.
    rows = (n_elems // (SUBLANES * LANES)) * SUBLANES
    n_main = rows * LANES

    # Tiny-input fallback: plain XLA beats a pallas_call launch here.  Raise
    # `min_kernel_elems` (e.g. to ~256K) in production to skip the kernel for
    # anything under ~1 MiB of input.
    if n_main < max(min_kernel_elems, SUBLANES * LANES):
        return _jnp_charbonnier_sum(flat_p, flat_l) / n_elems

    # <1024-element tail: a few plain-jnp ops; avoids any full-array pad/copy.
    if n_main < n_elems:
        tail_sum = _jnp_charbonnier_sum(flat_p[n_main:], flat_l[n_main:])
    else:
        tail_sum = jnp.float32(0.0)

    p2 = flat_p[:n_main].reshape(rows, LANES)
    l2 = flat_l[:n_main].reshape(rows, LANES)

    num_cores, block_bytes = _chip_config()
    itemsize = max(jnp.dtype(pred.dtype).itemsize,
                   jnp.dtype(label.dtype).itemsize)
    # Dtype-aware streaming block: bf16 gets 2x the rows of f32 per step.
    budget_rows = max(32, (block_bytes // (LANES * itemsize)) // 32 * 32)

    tile_rows = min(budget_rows, rows)          # rows % 8 == 0 by construction
    acc_rows = 32 if tile_rows % 32 == 0 else SUBLANES  # wider acc -> add ILP
    num_tiles = pl.cdiv(rows, tile_rows)

    # Partition only across real TensorCores (v7x) and only if both get work.
    n_part = num_cores if (num_cores > 1 and num_tiles >= num_cores) else 1
    tiles_per_part = pl.cdiv(num_tiles, n_part)

    if num_tiles % n_part == 0:
        # Exact grid: no clamping, no overshoot DMA (always the case on 1 TC).
        def data_index_map(p, j):
            return (p * tiles_per_part + j, 0)
    else:
        # At most one clamped overshoot step (2 TCs, odd tile count); its
        # compute is fully masked in-kernel and contributes zero.
        def data_index_map(p, j):
            return (jnp.minimum(p * tiles_per_part + j, num_tiles - 1), 0)

    kernel = functools.partial(
        _charbonnier_kernel, eps=eps, rows_total=rows, tile_rows=tile_rows,
        tiles_per_part=tiles_per_part, acc_rows=acc_rows)

    in_bytes = (jnp.dtype(pred.dtype).itemsize
                + jnp.dtype(label.dtype).itemsize)
    cost = pl.CostEstimate(
        flops=4 * n_main,
        transcendentals=n_main,
        bytes_accessed=n_main * in_bytes + n_part * acc_rows * LANES * 4)

    # TODO(synk): profile on v7x to confirm the leading "parallel" axis shards
    # across both TensorCores; if not, switch it to pltpu.CORE_PARALLEL.
    partials = pl.pallas_call(
        kernel,
        out_shape=jax.ShapeDtypeStruct((n_part, acc_rows, LANES), jnp.float32),
        grid_spec=pltpu.PrefetchScalarGridSpec(
            num_scalar_prefetch=0,
            grid=(n_part, tiles_per_part),
            in_specs=[
                pl.BlockSpec((tile_rows, LANES), data_index_map),
                pl.BlockSpec((tile_rows, LANES), data_index_map),
            ],
            out_specs=pl.BlockSpec((1, acc_rows, LANES),
                                   lambda p, j: (p, 0, 0)),
        ),
        compiler_params=pltpu.CompilerParams(
            dimension_semantics=("parallel", "arbitrary")),
        cost_estimate=cost,
    )(p2, l2)

    return (jnp.sum(partials) + tail_sum) / n_elems


if __name__ == "__main__":
    key = jax.random.PRNGKey(0)
    k1, k2 = jax.random.split(key)

    # Small shapes consistent with an image-restoration loss: N, C, H, W.
    pred = jax.random.normal(k1, (2, 4, 16, 16), dtype=jnp.float32)
    label = jax.random.normal(k2, (2, 4, 16, 16), dtype=jnp.float32)

    loss = charbonnier_loss(pred, label, eps=0.01)
    loss = jax.block_until_ready(loss)
    ref = jnp.mean(jnp.sqrt((pred - label) ** 2 + 0.01))
    assert jnp.allclose(loss, ref, atol=1e-5, rtol=1e-5), (loss, ref)

    # Second check: element count not a multiple of 128 -> exercises the
    # jnp tail path alongside the kernel's main region.
    k3, k4 = jax.random.split(k2)
    pred2 = jax.random.normal(k3, (2, 3, 33, 47), dtype=jnp.float32)
    label2 = jax.random.normal(k4, (2, 3, 33, 47), dtype=jnp.float32)
    loss2 = jax.block_until_ready(charbonnier_loss(pred2, label2, eps=0.01))
    ref2 = jnp.mean(jnp.sqrt((pred2 - label2) ** 2 + 0.01))
    assert jnp.allclose(loss2, ref2, atol=1e-5, rtol=1e-5), (loss2, ref2)

    print("KERNEL_OK")
</pallas_src>

<mosaic_0001>
module attributes {stable_mosaic.version = 11 : i64} {
  func.func @_charbonnier_kernel(%arg0: i32, %arg1: i32, %arg2: memref<16x128xf32, #tpu.memory_space<vmem>>, %arg3: memref<16x128xf32, #tpu.memory_space<vmem>>, %arg4: memref<1x8x128xf32, #tpu.memory_space<vmem>>) attributes {dimension_semantics = [#tpu.dimension_semantics<parallel>, #tpu.dimension_semantics<arbitrary>], iteration_bounds = array<i64: 1, 1>, scalar_prefetch = 0 : i64, scratch_operands = 0 : i64, tpu.core_type = #tpu.core_type<tc>, window_params = [{transform_indices = @transform_0, window_bounds = array<i64: 16, 128>}, {transform_indices = @transform_1, window_bounds = array<i64: 16, 128>}, {transform_indices = @transform_2, window_bounds = array<i64: 1, 8, 128>}]} {
    %c0_i32 = arith.constant 0 : i32
    %0 = arith.cmpi eq, %arg1, %c0_i32 : i32
    %1 = arith.extui %0 : i1 to i32
    %c0_i32_0 = arith.constant 0 : i32
    %2 = arith.cmpi ne, %1, %c0_i32_0 : i32
    scf.if %2 {
      %cst_8 = arith.constant 0.000000e+00 : f32
      %20 = vector.broadcast %cst_8 : f32 to vector<1x8x128xf32>
      %c0_9 = arith.constant 0 : index
      %c0_10 = arith.constant 0 : index
      %c0_11 = arith.constant 0 : index
      %21 = vector.load %arg4[%c0_9, %c0_10, %c0_11] : memref<1x8x128xf32, #tpu.memory_space<vmem>>, vector<1x8x128xf32>
      tpu.vector_store %arg4[%c0_9, %c0_10, %c0_11], %20 {strides = array<i32>} : memref<1x8x128xf32, #tpu.memory_space<vmem>>, vector<1x8x128xf32>,
    } else {
    }
    %c1_i32 = arith.constant 1 : i32
    %3 = arith.muli %arg0, %c1_i32 : i32
    %4 = arith.addi %3, %arg1 : i32
    %c16_i32 = arith.constant 16 : i32
    %5 = arith.muli %4, %c16_i32 : i32
    %c0 = arith.constant 0 : index
    %c0_1 = arith.constant 0 : index
    %6 = vector.load %arg2[%c0, %c0_1] : memref<16x128xf32, #tpu.memory_space<vmem>>, vector<16x128xf32>
    %c0_2 = arith.constant 0 : index
    %c0_3 = arith.constant 0 : index
    %7 = vector.load %arg3[%c0_2, %c0_3] : memref<16x128xf32, #tpu.memory_space<vmem>>, vector<16x128xf32>
    %8 = arith.subf %6, %7 : vector<16x128xf32>
    %9 = arith.mulf %8, %8 : vector<16x128xf32>
    %cst = arith.constant 0.00999999977 : f32
    %10 = vector.broadcast %cst : f32 to vector<16x128xf32>
    %11 = arith.addf %9, %10 : vector<16x128xf32>
    %12 = math.sqrt %11 : vector<16x128xf32>
    %c16_i32_4 = arith.constant 16 : i32
    %13 = arith.addi %5, %c16_i32_4 : i32
    %c16_i32_5 = arith.constant 16 : i32
    %14 = arith.cmpi sle, %13, %c16_i32_5 : i32
    %15 = arith.extui %14 : i1 to i32
    %c0_i32_6 = arith.constant 0 : i32
    %16 = arith.cmpi ne, %15, %c0_i32_6 : i32
    scf.if %16 {
      %20 = vector.shape_cast %12 : vector<16x128xf32> to vector<2x8x128xf32>
      %cst_8 = arith.constant dense<0.000000e+00> : vector<8x128xf32>
      %21 = vector.multi_reduction <add>, %20, %cst_8 [0] : vector<2x8x128xf32> to vector<8x128xf32>
      %c0_9 = arith.constant 0 : index
      %c0_10 = arith.constant 0 : index
      %c0_11 = arith.constant 0 : index
      %22 = vector.load %arg4[%c0_9, %c0_10, %c0_11] : memref<1x8x128xf32, #tpu.memory_space<vmem>>, vector<1x8x128xf32>
      %23 = vector.shape_cast %21 : vector<8x128xf32> to vector<1x8x128xf32>
      %24 = arith.addf %22, %23 : vector<1x8x128xf32>
      %c0_12 = arith.constant 0 : index
      %c0_13 = arith.constant 0 : index
      %c0_14 = arith.constant 0 : index
      %25 = vector.load %arg4[%c0_12, %c0_13, %c0_14] : memref<1x8x128xf32, #tpu.memory_space<vmem>>, vector<1x8x128xf32>
      tpu.vector_store %arg4[%c0_12, %c0_13, %c0_14], %24 {strides = array<i32>} : memref<1x8x128xf32, #tpu.memory_space<vmem>>, vector<1x8x128xf32>,
    } else {
    }
    %true = arith.constant true
    %17 = arith.xori %14, %true : i1
    %18 = arith.extui %17 : i1 to i32
    %c0_i32_7 = arith.constant 0 : i32
    %19 = arith.cmpi ne, %18, %c0_i32_7 : i32
    scf.if %19 {
      %20 = tpu.iota {dimensions = array<i32: 0>} : vector<16x128xi32>
      %21 = vector.broadcast %5 : i32 to vector<16x128xi32>
      %22 = arith.addi %21, %20 : vector<16x128xi32>
      %c16_i32_8 = arith.constant 16 : i32
      %23 = vector.broadcast %c16_i32_8 : i32 to vector<16x128xi32>
      %24 = arith.cmpi slt, %22, %23 : vector<16x128xi32>
      %cst_9 = arith.constant 0.000000e+00 : f32
      %25 = vector.broadcast %cst_9 : f32 to vector<16x128xf32>
      %26 = arith.select %24, %12, %25 : vector<16x128xi1>, vector<16x128xf32>
      %27 = vector.shape_cast %26 : vector<16x128xf32> to vector<2x8x128xf32>
      %cst_10 = arith.constant dense<0.000000e+00> : vector<8x128xf32>
      %28 = vector.multi_reduction <add>, %27, %cst_10 [0] : vector<2x8x128xf32> to vector<8x128xf32>
      %c0_11 = arith.constant 0 : index
      %c0_12 = arith.constant 0 : index
      %c0_13 = arith.constant 0 : index
      %29 = vector.load %arg4[%c0_11, %c0_12, %c0_13] : memref<1x8x128xf32, #tpu.memory_space<vmem>>, vector<1x8x128xf32>
      %30 = vector.shape_cast %28 : vector<8x128xf32> to vector<1x8x128xf32>
      %31 = arith.addf %29, %30 : vector<1x8x128xf32>
      %c0_14 = arith.constant 0 : index
      %c0_15 = arith.constant 0 : index
      %c0_16 = arith.constant 0 : index
      %32 = vector.load %arg4[%c0_14, %c0_15, %c0_16] : memref<1x8x128xf32, #tpu.memory_space<vmem>>, vector<1x8x128xf32>
      tpu.vector_store %arg4[%c0_14, %c0_15, %c0_16], %31 {strides = array<i32>} : memref<1x8x128xf32, #tpu.memory_space<vmem>>, vector<1x8x128xf32>,
    } else {
    }
    return
  }
  func.func @transform_0(%arg0: i32, %arg1: i32) -> (i32, i32) {
    %c1_i32 = arith.constant 1 : i32
    %0 = arith.muli %arg0, %c1_i32 : i32
    %1 = arith.addi %0, %arg1 : i32
    %c0_i32 = arith.constant 0 : i32
    %c0_i32_0 = arith.constant 0 : i32
    return %1, %c0_i32 : i32, i32
  }
  func.func @transform_1(%arg0: i32, %arg1: i32) -> (i32, i32) {
    %c1_i32 = arith.constant 1 : i32
    %0 = arith.muli %arg0, %c1_i32 : i32
    %1 = arith.addi %0, %arg1 : i32
    %c0_i32 = arith.constant 0 : i32
    %c0_i32_0 = arith.constant 0 : i32
    return %1, %c0_i32 : i32, i32
  }
  func.func @transform_2(%arg0: i32, %arg1: i32) -> (i32, i32, i32) {
    %c0_i32 = arith.constant 0 : i32
    %c0_i32_0 = arith.constant 0 : i32
    %c0_i32_1 = arith.constant 0 : i32
    return %arg0, %c0_i32, %c0_i32_0 : i32, i32, i32
  }
}

</mosaic_0001>

<llo_original>
// kernel: tpu_custom_call.1
$region0: #{tpu_custom_call.1}
  #allocation0 [shape = 'u32[]', space=smem, size = 0x4, offset = 0x4, fixed_abs, tag = 'smem constant byte address 0x4 - core index']
  #allocation1 [shape = 'u32[72,128]{1,0:T(1,128)}', space=vmem, size = 0x9000, scoped, tag = 'internal scratch']
  %s0 = inlined_call_operand.hbm [shape: f32[16,128], index: 0, kind: input, shape index: {}]
  %s1 = inlined_call_operand.hbm [shape: f32[16,128], index: 1, kind: input, shape index: {}]
  %s2 = inlined_call_operand.hbm [shape: f32[1,8,128], index: 2, kind: output, shape index: {}]
  %s3 = sld [smem:[#allocation0]]
  $region38: #{tpu_custom_call.1} parent=0
    _
  %s5 = ssub.s32 1, %s3
  %s6 = scalar_select 0, %s5, %s3
  $region1: #{tpu_custom_call.1} parent=0
    #allocation2 [shape = 'u8[8192]{0}', space=vmem, size = 0x2000, scoped, tag = 'input window, operand 0, single buffered']
    #allocation3 [shape = 's32[1]{0}', space=sflag, size = 0x4, scoped, tag = 'scoped memory for tpu_custom_call.1']
    #allocation4 [shape = 's32[1]{0}', space=sflag, size = 0x4, scoped, tag = 'scoped memory for tpu_custom_call.1']
    #allocation5 [shape = 'u8[8192]{0}', space=vmem, size = 0x2000, scoped, tag = 'input window, operand 1, single buffered']
    #allocation6 [shape = 's32[1]{0}', space=sflag, size = 0x4, scoped, tag = 'scoped memory for tpu_custom_call.1']
    #allocation7 [shape = 'u8[4096]{0}', space=vmem, size = 0x1000, scoped, tag = 'output window, operand 0, single buffered']
    %7 = vsyncpa [#allocation3], 0
    %8 = vsyncpa [#allocation6], 0
    %9 = vsyncpa [#allocation4], 0
    // Predicated region
    $region2: #{tpu_custom_call.1} parent=1 // pred_check
      _
    $region3: #{tpu_custom_call.1} parent=1 // pred_check_branch
      %11 = sbr.rel (0) target = $region5
    $region4: #{tpu_custom_call.1} parent=1 // pred_region
      %s12 = sadd.s32 0, 0
      %s13 = smul.u32 2, %s12
      %15 = vsyncadd [#allocation3], 0
      %s16 = smul.addr %s13, 8
      %s17 = scalar_lea.hbm %s0, %s16
      %s18 = sshll.u32 %s17, 4
      %s19 = int_to_ptr.hbm [resolvable:$true] %s18
      %s20 = sshll.u32 [#allocation2], 4
      %s21 = int_to_ptr.vmem [resolvable:$true] %s20
      %26 = dma.hbm_to_vmem [thread:$0]  %s19, 256, %s21, [#allocation3], 128, 128, 8
    $region5: #{tpu_custom_call.1} parent=1 // pred_fallthru
      _
    // Predicated region
    $region6: #{tpu_custom_call.1} parent=1 // pred_check
      _
    $region7: #{tpu_custom_call.1} parent=1 // pred_check_branch
      %28 = sbr.rel (0) target = $region9
    $region8: #{tpu_custom_call.1} parent=1 // pred_region
      %s29 = sadd.s32 0, 0
      %s30 = smul.u32 2, %s29
      %32 = vsyncadd [#allocation6], 0
      %s33 = smul.addr %s30, 8
      %s34 = scalar_lea.hbm %s1, %s33
      %s35 = sshll.u32 %s34, 4
      %s36 = int_to_ptr.hbm [resolvable:$true] %s35
      %s37 = sshll.u32 [#allocation5], 4
      %s38 = int_to_ptr.vmem [resolvable:$true] %s37
      %43 = dma.hbm_to_vmem [thread:$0]  %s36, 256, %s38, [#allocation6], 128, 128, 8
    $region9: #{tpu_custom_call.1} parent=1 // pred_fallthru
      _
    // Predicated region
    $region10: #{tpu_custom_call.1} parent=1 // pred_check
      _
    $region11: #{tpu_custom_call.1} parent=1 // pred_check_branch
      %45 = sbr.rel (0) target = $region13
    $region12: #{tpu_custom_call.1} parent=1 // pred_region
      %47 = dma.done [#allocation3], 256
    $region13: #{tpu_custom_call.1} parent=1 // pred_fallthru
      _
    // Predicated region
    $region14: #{tpu_custom_call.1} parent=1 // pred_check
      _
    $region15: #{tpu_custom_call.1} parent=1 // pred_check_branch
      %49 = sbr.rel (0) target = $region17
    $region16: #{tpu_custom_call.1} parent=1 // pred_region
      %51 = dma.done [#allocation6], 256
    $region17: #{tpu_custom_call.1} parent=1 // pred_fallthru
      _
    %s52 = sadd.s32 0, 0
    %s53 = smul.u32 2, %s52
    %s54 = sadd.s32 0, 0
    %s55 = smul.u32 2, %s54
    %p56 = scmp.eq.s32.totalorder 0, 0
    // Predicated region
    $region18: #{tpu_custom_call.1} parent=1 // pred_check
      %p57 = pneg %p56
    $region19: #{tpu_custom_call.1} parent=1 // pred_check_branch
      %59 = sbr.rel (%p57) target = $region21
    $region20: #{tpu_custom_call.1} parent=1 // pred_region
      %60 = vst [vmem:[#allocation7] sm:$0xff] 0.0
    $region21: #{tpu_custom_call.1} parent=1 // pred_fallthru
      _
    %s61 = sadd.s32 0, 0
    %s62 = smul.u32 %s61, 16
    %v63 = vld [vmem:[#allocation2] sm:$0xff]
    %v64 = vld [vmem:[#allocation2 + $0x8] sm:$0xff]
    %v65 = vld [vmem:[#allocation5] sm:$0xff]
    %v66 = vld [vmem:[#allocation5 + $0x8] sm:$0xff]
    %v67 = vsub.f32 %v63, %v65
    %v68 = vsub.f32 %v64, %v66
    %v69 = vmul.f32 %v67, %v67
    %v70 = vmul.f32 %v68, %v68
    %v71 = vadd.f32 %v69, 0.01
    %v72 = vadd.f32 %v70, 0.01
    %v73 = vrsqrt.pop %v71
    %v74 = vmul.f32 %v73, %v71
    %v75 = vmul.f32 %v74, %v73
    %v76 = vmul.f32 0.5, %v75
    %v77 = vsub.f32 1.5, %v76
    %v78 = vmul.f32 %v73, %v77
    %v79 = vmul.f32 %v71, %v78
    %vm80 = vcmp.eq.f32.partialorder %v71, inf
    %v81 = vsel %vm80, %v71, %v79
    %vm82 = vcmp.eq.f32.partialorder %v71, 0.0
    %v83 = vand.u32 %v71, 2147483648
    %v84 = vsel %vm82, %v83, %v81
    %v85 = vrsqrt.pop %v72
    %v86 = vmul.f32 %v85, %v72
    %v87 = vmul.f32 %v86, %v85
    %v88 = vmul.f32 0.5, %v87
    %v89 = vsub.f32 1.5, %v88
    %v90 = vmul.f32 %v85, %v89
    %v91 = vmul.f32 %v72, %v90
    %vm92 = vcmp.eq.f32.partialorder %v72, inf
    %v93 = vsel %vm92, %v72, %v91
    %vm94 = vcmp.eq.f32.partialorder %v72, 0.0
    %v95 = vand.u32 %v72, 2147483648
    %v96 = vsel %vm94, %v95, %v93
    %s97 = sadd.s32 %s62, 16
    %p98 = scmp.le.s32.totalorder %s97, 16
    // Predicated region
    $region22: #{tpu_custom_call.1} parent=1 // pred_check
      %p99 = pneg %p98
    $region23: #{tpu_custom_call.1} parent=1 // pred_check_branch
      %101 = sbr.rel (%p99) target = $region25
    $region24: #{tpu_custom_call.1} parent=1 // pred_region
      %v102 = vadd.f32 %v84, %v96
      %v103 = vld [vmem:[#allocation7] sm:$0xff]
      %v104 = vadd.f32 %v103, %v102
      %105 = vst [vmem:[#allocation7] sm:$0xff] %v104
    $region25: #{tpu_custom_call.1} parent=1 // pred_fallthru
      _
    %p106 = scmp.gt.s32.totalorder %s97, 16
    // Predicated region
    $region26: #{tpu_custom_call.1} parent=1 // pred_check
      %p107 = pneg %p106
    $region27: #{tpu_custom_call.1} parent=1 // pred_check_branch
      %109 = sbr.rel (%p107) target = $region29
    $region28: #{tpu_custom_call.1} parent=1 // pred_region
      %v110 = vlaneseq
      %v111 = vshrl.u32 %v110, 7
      %v112 = vadd.s32 %v111, 8
      %v113 = vstv %s62
      %v114 = vadd.s32 %v113, %v111
      %v115 = vadd.s32 %v113, %v112
      %vm116 = vcmp.lt.s32.totalorder %v114, 16
      %vm117 = vcmp.lt.s32.totalorder %v115, 16
      %v118 = vsel %vm116, %v84, 0.0
      %v119 = vsel %vm117, %v96, 0.0
      %v120 = vadd.f32 %v118, %v119
      %v121 = vld [vmem:[#allocation7] sm:$0xff]
      %v122 = vadd.f32 %v121, %v120
      %123 = vst [vmem:[#allocation7] sm:$0xff] %v122
    $region29: #{tpu_custom_call.1} parent=1 // pred_fallthru
      _
    // Predicated region
    $region30: #{tpu_custom_call.1} parent=1 // pred_check
      _
    $region31: #{tpu_custom_call.1} parent=1 // pred_check_branch
      %125 = sbr.rel (0) target = $region33
    $region32: #{tpu_custom_call.1} parent=1 // pred_region
      %127 = vsyncadd [#allocation4], 0
      %s129 = sshll.u32 [#allocation7], 4
      %s130 = int_to_ptr.vmem [resolvable:$true] %s129
      %s131 = sshll.u32 %s2, 4
      %s132 = int_to_ptr.hbm [resolvable:$true] %s131
      %134 = dma.vmem_to_hbm [thread:$0]  %s130, 128, %s132, [#allocation4]
    $region33: #{tpu_custom_call.1} parent=1 // pred_fallthru
      _
    // Predicated region
    $region34: #{tpu_custom_call.1} parent=1 // pred_check
      _
    $region35: #{tpu_custom_call.1} parent=1 // pred_check_branch
      %136 = sbr.rel (0) target = $region37
    $region36: #{tpu_custom_call.1} parent=1 // pred_region
      %138 = dma.done [#allocation4], 128
    $region37: #{tpu_custom_call.1} parent=1 // pred_fallthru
      _
    %139 = vsyncpa [#allocation3], 1
    %140 = vsyncpa [#allocation6], 1
    %141 = vsyncpa [#allocation4], 1

</llo_original>
